<compile_context>
chip_gen: v6e
topology: v6e:2x2x1
jax: 0.10.0
libtpu: 0.0.40
codegen_flags: <defaults>
</compile_context>

<pallas_src>
import functools

import jax
import jax.numpy as jnp
import numpy as np
from jax.experimental import pallas as pl
from jax.experimental.pallas import tpu as pltpu


# ----------------------------------------------------------------------------
# Kernel: full generator rollout, one grid step per timestep.
# ----------------------------------------------------------------------------
def _rollout_kernel(clip_val, forget_bias,
                    x_ref,        # (1, B, I)   per-step external input
                    h0_ref,       # (B, G)      initial hidden state
                    src_ref,      # (B, S, V)   source sequence (resident)
                    score_s_ref,  # (B, S, V)   src @ W_alpha_s (time-invariant, resident)
                    wx_ref,       # (I, 3G)     fused [r|u|c] input projection
                    wh_ref,       # (G, 2G)     [r|u] hidden projection
                    bh_ref,       # (1, 2G)
                    wrhc_ref,     # (G, G)      candidate hidden projection
                    brhc_ref,     # (1, G)
                    wgen_ref,     # (G, V+G)    fused [attn_alpha_g | attn_out_g]
                    wos_ref,      # (V, G)      attn_out source-columns
                    wfac_ref,     # (G, F)      fc_factors
                    gen_seq_ref,  # (T, B, G)   output (resident, flushed once)
                    fac_seq_ref,  # (T, B, F)   output (resident, flushed once)
                    h_sc):        # (B, G)      VMEM scratch: recurrent state
    t = pl.program_id(0)
    G = h_sc.shape[-1]
    V = wos_ref.shape[0]

    @pl.when(t == 0)
    def _init():
        h_sc[...] = h0_ref[...]

    x = x_ref[0]          # (B, I)
    h = h_sc[...]         # (B, G)

    # ---------------- LFADS GenGRU cell ----------------
    px = jnp.dot(x, wx_ref[...], preferred_element_type=jnp.float32)            # (B, 3G)
    ph = jnp.dot(h, wh_ref[...], preferred_element_type=jnp.float32) + bh_ref[...]
    r = jax.nn.sigmoid(px[:, :G] + ph[:, :G])
    u = jax.nn.sigmoid(px[:, G:2 * G] + ph[:, G:] + forget_bias)
    c = jnp.tanh(px[:, 2 * G:]
                 + jnp.dot(r * h, wrhc_ref[...], preferred_element_type=jnp.float32)
                 + brhc_ref[...])
    gen = jnp.clip(u * h + (1.0 - u) * c, -clip_val, clip_val)                   # (B, G)

    # ---------------- source attention ----------------
    # One fused matmul for everything that multiplies gen:
    #   columns [0:V]   -> attn_alpha generator-term
    #   columns [V:V+G] -> attn_out   generator-term (independent of ctx)
    pg = jnp.dot(gen, wgen_ref[...], preferred_element_type=jnp.float32)         # (B, V+G)
    score_g = pg[:, :V]
    out_g = pg[:, V:]

    e = jax.nn.relu(score_g[:, None, :] + score_s_ref[...])                      # (B, S, V)
    # softmax over S (torch.softmax(dim=1)), stabilized; relu() guarantees a
    # zero max-term so the denominator is >= 1.
    m = jnp.max(e, axis=1, keepdims=True)
    p = jnp.exp(e - m)
    denom = jnp.sum(p, axis=1, keepdims=True)                                    # (B, 1, V)
    inv = pl.reciprocal(denom, approx=True)          # EUP slot (nearly free)
    inv = inv * (2.0 - denom * inv)                  # one Newton step -> ~f32 accuracy
    ctx = jnp.sum(src_ref[...] * (p * inv), axis=1)                              # (B, V)

    attn_out = jnp.tanh(out_g + jnp.dot(ctx, wos_ref[...],
                                        preferred_element_type=jnp.float32))     # (B, G)
    # dropout(p=0.0) is identity; fc_factors has no bias (factor_bias=False)
    fac = jnp.dot(attn_out, wfac_ref[...], preferred_element_type=jnp.float32)   # (B, F)

    h_sc[...] = gen
    gen_seq_ref[t] = gen.astype(gen_seq_ref.dtype)
    fac_seq_ref[t] = fac.astype(fac_seq_ref.dtype)


# ----------------------------------------------------------------------------
# Host-side one-time weight fusion / transposition to (in, out) layout.
# ----------------------------------------------------------------------------
def _prepare_weights(params):
    return dict(
        wx=jnp.concatenate([params["w_x_ru"].T, params["w_x_c"].T], axis=1),     # (I, 3G)
        wh=params["w_h_ru"].T,                                                    # (G, 2G)
        bh=params["b_h_ru"],                                                      # (1, 2G)
        wrhc=params["w_rh_c"].T,                                                  # (G, G)
        brhc=params["b_rh_c"],                                                    # (1, G)
        wgen=jnp.concatenate([params["w_attn_alpha_g"].T,
                              params["w_attn_out_g"].T], axis=1),                 # (G, V+G)
        was=params["w_attn_alpha_s"].T,                                           # (V, V)
        wos=params["w_attn_out_s"].T,                                             # (V, G)
        wfac=params["w_fc_factors"].T,                                            # (G, F)
    )


@functools.partial(jax.jit, static_argnames=("clip_val", "forget_bias"))
def lfads_generator_source_attn_rollout(xs, h0, src, params, *,
                                        clip_val=5.0, forget_bias=1.0):
    """Run the cell over a whole sequence in a single pallas_call.

    xs : (T, B, I), h0 : (B, G), src : (S, B, V) (PyTorch seq-first layout).
    Returns (gen_seq (T, B, G), fac_seq (T, B, F)).
    """
    T, B, I = xs.shape
    G = h0.shape[-1]
    S, _, V = src.shape
    w = _prepare_weights(params)
    F = w["wfac"].shape[-1]

    # Time-invariant work hoisted out of the per-step path (once per sequence):
    src_bsv = jnp.transpose(src, (1, 0, 2))                         # (B, S, V)
    score_s = jnp.einsum("sbv,vw->bsw", src, w["was"])              # (B, S, V)

    const3 = lambda shape: pl.BlockSpec(shape, lambda t: (0, 0, 0))
    const2 = lambda shape: pl.BlockSpec(shape, lambda t: (0, 0))

    kernel = functools.partial(_rollout_kernel, float(clip_val), float(forget_bias))
    gen_seq, fac_seq = pl.pallas_call(
        kernel,
        out_shape=(jax.ShapeDtypeStruct((T, B, G), jnp.float32),
                   jax.ShapeDtypeStruct((T, B, F), jnp.float32)),
        grid_spec=pltpu.PrefetchScalarGridSpec(
            num_scalar_prefetch=0,
            grid=(T,),
            in_specs=[
                pl.BlockSpec((1, B, I), lambda t: (t, 0, 0)),       # x_t (only per-step DMA)
                const2((B, G)),                                     # h0
                const3((B, S, V)),                                  # src      (resident)
                const3((B, S, V)),                                  # score_s  (resident)
                const2((I, 3 * G)),                                 # wx       (resident)
                const2((G, 2 * G)),                                 # wh
                const2((1, 2 * G)),                                 # bh
                const2((G, G)),                                     # wrhc
                const2((1, G)),                                     # brhc
                const2((G, V + G)),                                 # wgen
                const2((V, G)),                                     # wos
                const2((G, F)),                                     # wfac
            ],
            # Outputs stay resident in VMEM across the grid and are written back
            # to HBM once at the end (lane-dense flush instead of per-step vst.msk).
            out_specs=(const3((T, B, G)), const3((T, B, F))),
            scratch_shapes=[pltpu.VMEM((B, G), jnp.float32)],
        ),
        # T is a true recurrence -> sequential.  On v7x, add a leading
        # "parallel" grid axis over batch blocks once B is large enough to split
        # across the two TensorCores.  Resident footprint here is <1 MiB, far
        # under even v7x's 64 MiB VMEM, so no vmem_limit override is needed.
        compiler_params=pltpu.CompilerParams(
            dimension_semantics=("arbitrary",)),
    )(xs, h0, src_bsv, score_s,
      w["wx"], w["wh"], w["bh"], w["wrhc"], w["brhc"],
      w["wgen"], w["wos"], w["wfac"])
    return gen_seq, fac_seq


def lfads_generator_source_attn_cell(x, h, src, params, *, clip_val=5.0, forget_bias=1.0):
    """Single-step module forward (matches the PyTorch cell):
    x (B, I), h (B, G), src (S, B, V). Returns (gen (B, G), factors (B, F))."""
    gen_seq, fac_seq = lfads_generator_source_attn_rollout(
        x[None], h, src, params, clip_val=clip_val, forget_bias=forget_bias)
    return gen_seq[0], fac_seq[0]


# ----------------------------------------------------------------------------
# Parameter init (PyTorch-layout weights) and pure-JAX references.
# ----------------------------------------------------------------------------
def init_params(key, input_size, generator_size, factor_size, source_size):
    I, G, F, V = input_size, generator_size, factor_size, source_size
    ks = jax.random.split(key, 11)

    def unif(k, shape, fan_in):
        bound = 1.0 / np.sqrt(fan_in)
        return jax.random.uniform(k, shape, jnp.float32, -bound, bound)

    return {
        # GenGRU cell
        "w_x_ru": unif(ks[0], (2 * G, I), I),
        "w_h_ru": unif(ks[1], (2 * G, G), G),
        "b_h_ru": unif(ks[2], (1, 2 * G), G),
        "w_x_c":  unif(ks[3], (G, I), I),
        "w_rh_c": unif(ks[4], (G, G), G),
        "b_rh_c": unif(ks[5], (1, G), G),
        # attn_alpha: Linear(G+V -> V, bias=False), weight (V, G+V) split columnwise
        "w_attn_alpha_g": unif(ks[6], (V, G), G + V),
        "w_attn_alpha_s": unif(ks[7], (V, V), G + V),
        # attn_out: Linear(G+V -> G, bias=False), weight (G, G+V) split columnwise
        "w_attn_out_g": unif(ks[8], (G, G), G + V),
        "w_attn_out_s": unif(ks[9], (G, V), G + V),
        # fc_factors: Linear(G -> F, bias=False)
        "w_fc_factors": unif(ks[10], (F, G), G),
    }


def reference_step(x, h, src, params, clip_val=5.0, forget_bias=1.0):
    """Pure-JAX mirror of the PyTorch forward (one step)."""
    G = h.shape[-1]
    gate_x = x @ params["w_x_ru"].T
    gate_h = h @ params["w_h_ru"].T + params["b_h_ru"]
    r = jax.nn.sigmoid(gate_x[:, :G] + gate_h[:, :G])
    u = jax.nn.sigmoid(gate_x[:, G:] + gate_h[:, G:] + forget_bias)
    c = jnp.tanh(x @ params["w_x_c"].T + (r * h) @ params["w_rh_c"].T + params["b_rh_c"])
    gen = jnp.clip(u * h + (1.0 - u) * c, -clip_val, clip_val)

    S = src.shape[0]
    src_p = jnp.transpose(src, (1, 0, 2))                             # (B, S, V)
    cat = jnp.concatenate([jnp.repeat(gen[:, None, :], S, axis=1), src_p], axis=-1)
    wa = jnp.concatenate([params["w_attn_alpha_g"], params["w_attn_alpha_s"]], axis=1)
    attn_w = jax.nn.softmax(jax.nn.relu(cat @ wa.T), axis=1)
    ctx = (src_p * attn_w).sum(axis=1)
    wo = jnp.concatenate([params["w_attn_out_g"], params["w_attn_out_s"]], axis=1)
    attn_out = jnp.tanh(jnp.concatenate([gen, ctx], axis=-1) @ wo.T)
    fac = attn_out @ params["w_fc_factors"].T
    return gen, fac


def reference_rollout(xs, h0, src, params, clip_val=5.0, forget_bias=1.0):
    def step(h, x):
        g, f = reference_step(x, h, src, params, clip_val, forget_bias)
        return g, (g, f)
    _, (gen_seq, fac_seq) = jax.lax.scan(step, h0, xs)
    return gen_seq, fac_seq


if __name__ == "__main__":
    B, S, T = 8, 8, 16
    INPUT, GEN, FACTOR, SOURCE = 16, 32, 8, 16

    key = jax.random.PRNGKey(0)
    kx, kh, ks, kp = jax.random.split(key, 4)
    xs = jax.random.normal(kx, (T, B, INPUT), jnp.float32)            # (T, B, I)
    h0 = jax.random.normal(kh, (B, GEN), jnp.float32)
    src = jax.random.normal(ks, (S, B, SOURCE), jnp.float32)          # PyTorch layout (S, B, V)
    params = init_params(kp, INPUT, GEN, FACTOR, SOURCE)

    # --- single-step forward (exact module semantics) ---
    gen1, fac1 = lfads_generator_source_attn_cell(xs[0], h0, src, params)
    jax.block_until_ready((gen1, fac1))
    gen1_ref, fac1_ref = reference_step(xs[0], h0, src, params)
    np.testing.assert_allclose(np.asarray(gen1), np.asarray(gen1_ref), rtol=1e-5, atol=1e-5)
    np.testing.assert_allclose(np.asarray(fac1), np.asarray(fac1_ref), rtol=1e-4, atol=1e-4)

    # --- full rollout in one kernel (grid over T, weights resident) ---
    gen_seq, fac_seq = lfads_generator_source_attn_rollout(xs, h0, src, params)
    jax.block_until_ready((gen_seq, fac_seq))
    gen_seq_ref, fac_seq_ref = reference_rollout(xs, h0, src, params)
    np.testing.assert_allclose(np.asarray(gen_seq), np.asarray(gen_seq_ref), rtol=1e-3, atol=1e-3)
    np.testing.assert_allclose(np.asarray(fac_seq), np.asarray(fac_seq_ref), rtol=1e-3, atol=1e-3)

    print("KERNEL_OK")
</pallas_src>

<mosaic_0001>
module attributes {stable_mosaic.version = 11 : i64} {
  func.func @_rollout_kernel(%arg0: i32, %arg1: memref<1x8x16xf32, #tpu.memory_space<vmem>>, %arg2: memref<8x32xf32, #tpu.memory_space<vmem>>, %arg3: memref<8x8x16xf32, #tpu.memory_space<vmem>>, %arg4: memref<8x8x16xf32, #tpu.memory_space<vmem>>, %arg5: memref<16x96xf32, #tpu.memory_space<vmem>>, %arg6: memref<32x64xf32, #tpu.memory_space<vmem>>, %arg7: memref<1x64xf32, #tpu.memory_space<vmem>>, %arg8: memref<32x32xf32, #tpu.memory_space<vmem>>, %arg9: memref<1x32xf32, #tpu.memory_space<vmem>>, %arg10: memref<32x48xf32, #tpu.memory_space<vmem>>, %arg11: memref<16x32xf32, #tpu.memory_space<vmem>>, %arg12: memref<32x8xf32, #tpu.memory_space<vmem>>, %arg13: memref<1x8x32xf32, #tpu.memory_space<vmem>>, %arg14: memref<1x8x8xf32, #tpu.memory_space<vmem>>, %arg15: memref<8x32xf32, #tpu.memory_space<vmem>>) attributes {dimension_semantics = [#tpu.dimension_semantics<arbitrary>], iteration_bounds = array<i64: 1>, scalar_prefetch = 0 : i64, scratch_operands = 1 : i64, tpu.core_type = #tpu.core_type<tc>, window_params = [{transform_indices = @transform_0, window_bounds = array<i64: 1, 8, 16>}, {pipeline_mode = #tpu.pipeline_mode<synchronous>, transform_indices = @transform_1, window_bounds = array<i64: 8, 32>}, {pipeline_mode = #tpu.pipeline_mode<synchronous>, transform_indices = @transform_2, window_bounds = array<i64: 8, 8, 16>}, {pipeline_mode = #tpu.pipeline_mode<synchronous>, transform_indices = @transform_3, window_bounds = array<i64: 8, 8, 16>}, {pipeline_mode = #tpu.pipeline_mode<synchronous>, transform_indices = @transform_4, window_bounds = array<i64: 16, 96>}, {pipeline_mode = #tpu.pipeline_mode<synchronous>, transform_indices = @transform_5, window_bounds = array<i64: 32, 64>}, {pipeline_mode = #tpu.pipeline_mode<synchronous>, transform_indices = @transform_6, window_bounds = array<i64: 1, 64>}, {pipeline_mode = #tpu.pipeline_mode<synchronous>, transform_indices = @transform_7, window_bounds = array<i64: 32, 32>}, {pipeline_mode = #tpu.pipeline_mode<synchronous>, transform_indices = @transform_8, window_bounds = array<i64: 1, 32>}, {pipeline_mode = #tpu.pipeline_mode<synchronous>, transform_indices = @transform_9, window_bounds = array<i64: 32, 48>}, {pipeline_mode = #tpu.pipeline_mode<synchronous>, transform_indices = @transform_10, window_bounds = array<i64: 16, 32>}, {pipeline_mode = #tpu.pipeline_mode<synchronous>, transform_indices = @transform_11, window_bounds = array<i64: 32, 8>}, {pipeline_mode = #tpu.pipeline_mode<synchronous>, transform_indices = @transform_12, window_bounds = array<i64: 1, 8, 32>}, {pipeline_mode = #tpu.pipeline_mode<synchronous>, transform_indices = @transform_13, window_bounds = array<i64: 1, 8, 8>}]} {
    %c0_i32 = arith.constant 0 : i32
    %0 = arith.cmpi eq, %arg0, %c0_i32 : i32
    %1 = arith.extui %0 : i1 to i32
    %c0_i32_0 = arith.constant 0 : i32
    %2 = arith.cmpi ne, %1, %c0_i32_0 : i32
    scf.if %2 {
      %c0_49 = arith.constant 0 : index
      %c0_50 = arith.constant 0 : index
      %91 = vector.load %arg2[%c0_49, %c0_50] : memref<8x32xf32, #tpu.memory_space<vmem>>, vector<8x32xf32>
      %c0_51 = arith.constant 0 : index
      %c0_52 = arith.constant 0 : index
      %92 = vector.load %arg15[%c0_51, %c0_52] : memref<8x32xf32, #tpu.memory_space<vmem>>, vector<8x32xf32>
      tpu.vector_store %arg15[%c0_51, %c0_52], %91 {strides = array<i32>} : memref<8x32xf32, #tpu.memory_space<vmem>>, vector<8x32xf32>,
    } else {
    }
    %c0 = arith.constant 0 : index
    %c0_1 = arith.constant 0 : index
    %c0_2 = arith.constant 0 : index
    %3 = vector.load %arg1[%c0, %c0_1, %c0_2] : memref<1x8x16xf32, #tpu.memory_space<vmem>>, vector<1x8x16xf32>
    %4 = vector.shape_cast %3 : vector<1x8x16xf32> to vector<8x16xf32>
    %c0_3 = arith.constant 0 : index
    %c0_4 = arith.constant 0 : index
    %5 = vector.load %arg15[%c0_3, %c0_4] : memref<8x32xf32, #tpu.memory_space<vmem>>, vector<8x32xf32>
    %c0_5 = arith.constant 0 : index
    %c0_6 = arith.constant 0 : index
    %6 = vector.load %arg5[%c0_5, %c0_6] : memref<16x96xf32, #tpu.memory_space<vmem>>, vector<16x96xf32>
    %cst = arith.constant dense<0.000000e+00> : vector<8x96xf32>
    %7 = tpu.matmul %4, %6, %cst {dimension_numbers = #tpu.dot_dimension_numbers<[1], [0], [0], [1], [0, 0, 1, 1], [], []>} : vector<8x16xf32>, vector<16x96xf32>, vector<8x96xf32> -> vector<8x96xf32>
    %c0_7 = arith.constant 0 : index
    %c0_8 = arith.constant 0 : index
    %8 = vector.load %arg6[%c0_7, %c0_8] : memref<32x64xf32, #tpu.memory_space<vmem>>, vector<32x64xf32>
    %cst_9 = arith.constant dense<0.000000e+00> : vector<8x64xf32>
    %9 = tpu.matmul %5, %8, %cst_9 {dimension_numbers = #tpu.dot_dimension_numbers<[1], [0], [0], [1], [0, 0, 1, 1], [], []>} : vector<8x32xf32>, vector<32x64xf32>, vector<8x64xf32> -> vector<8x64xf32>
    %c0_10 = arith.constant 0 : index
    %c0_11 = arith.constant 0 : index
    %10 = vector.load %arg7[%c0_10, %c0_11] : memref<1x64xf32, #tpu.memory_space<vmem>>, vector<1x64xf32>
    %11 = vector.broadcast %10 : vector<1x64xf32> to vector<8x64xf32>
    %12 = arith.addf %9, %11 : vector<8x64xf32>
    %13 = vector.extract_strided_slice %7 {offsets = [0, 0], sizes = [8, 32], strides = [1, 1]} : vector<8x96xf32> to vector<8x32xf32>
    %14 = vector.extract_strided_slice %12 {offsets = [0, 0], sizes = [8, 32], strides = [1, 1]} : vector<8x64xf32> to vector<8x32xf32>
    %15 = arith.addf %13, %14 : vector<8x32xf32>
    %16 = arith.negf %15 : vector<8x32xf32>
    %17 = math.exp %16 : vector<8x32xf32>
    %cst_12 = arith.constant 1.000000e+00 : f32
    %18 = vector.broadcast %cst_12 : f32 to vector<8x32xf32>
    %19 = arith.addf %18, %17 : vector<8x32xf32>
    %20 = arith.divf %18, %19 : vector<8x32xf32>
    %21 = vector.extract_strided_slice %7 {offsets = [0, 32], sizes = [8, 32], strides = [1, 1]} : vector<8x96xf32> to vector<8x32xf32>
    %22 = vector.extract_strided_slice %12 {offsets = [0, 32], sizes = [8, 32], strides = [1, 1]} : vector<8x64xf32> to vector<8x32xf32>
    %23 = arith.addf %21, %22 : vector<8x32xf32>
    %cst_13 = arith.constant 1.000000e+00 : f32
    %24 = vector.broadcast %cst_13 : f32 to vector<8x32xf32>
    %25 = arith.addf %23, %24 : vector<8x32xf32>
    %26 = arith.negf %25 : vector<8x32xf32>
    %27 = math.exp %26 : vector<8x32xf32>
    %cst_14 = arith.constant 1.000000e+00 : f32
    %28 = vector.broadcast %cst_14 : f32 to vector<8x32xf32>
    %29 = arith.addf %28, %27 : vector<8x32xf32>
    %30 = arith.divf %28, %29 : vector<8x32xf32>
    %31 = vector.extract_strided_slice %7 {offsets = [0, 64], sizes = [8, 32], strides = [1, 1]} : vector<8x96xf32> to vector<8x32xf32>
    %32 = arith.mulf %20, %5 : vector<8x32xf32>
    %c0_15 = arith.constant 0 : index
    %c0_16 = arith.constant 0 : index
    %33 = vector.load %arg8[%c0_15, %c0_16] : memref<32x32xf32, #tpu.memory_space<vmem>>, vector<32x32xf32>
    %cst_17 = arith.constant dense<0.000000e+00> : vector<8x32xf32>
    %34 = tpu.matmul %32, %33, %cst_17 {dimension_numbers = #tpu.dot_dimension_numbers<[1], [0], [0], [1], [0, 0, 1, 1], [], []>} : vector<8x32xf32>, vector<32x32xf32>, vector<8x32xf32> -> vector<8x32xf32>
    %35 = arith.addf %31, %34 : vector<8x32xf32>
    %c0_18 = arith.constant 0 : index
    %c0_19 = arith.constant 0 : index
    %36 = vector.load %arg9[%c0_18, %c0_19] : memref<1x32xf32, #tpu.memory_space<vmem>>, vector<1x32xf32>
    %37 = vector.broadcast %36 : vector<1x32xf32> to vector<8x32xf32>
    %38 = arith.addf %35, %37 : vector<8x32xf32>
    %39 = math.tanh %38 : vector<8x32xf32>
    %40 = arith.mulf %30, %5 : vector<8x32xf32>
    %cst_20 = arith.constant 1.000000e+00 : f32
    %41 = vector.broadcast %cst_20 : f32 to vector<8x32xf32>
    %42 = arith.subf %41, %30 : vector<8x32xf32>
    %43 = arith.mulf %42, %39 : vector<8x32xf32>
    %44 = arith.addf %40, %43 : vector<8x32xf32>
    %cst_21 = arith.constant -5.000000e+00 : f32
    %cst_22 = arith.constant 5.000000e+00 : f32
    %45 = vector.broadcast %cst_21 : f32 to vector<8x32xf32>
    %46 = arith.maximumf %45, %44 : vector<8x32xf32>
    %47 = vector.broadcast %cst_22 : f32 to vector<8x32xf32>
    %48 = arith.minimumf %47, %46 : vector<8x32xf32>
    %c0_23 = arith.constant 0 : index
    %c0_24 = arith.constant 0 : index
    %49 = vector.load %arg10[%c0_23, %c0_24] : memref<32x48xf32, #tpu.memory_space<vmem>>, vector<32x48xf32>
    %cst_25 = arith.constant dense<0.000000e+00> : vector<8x48xf32>
    %50 = tpu.matmul %48, %49, %cst_25 {dimension_numbers = #tpu.dot_dimension_numbers<[1], [0], [0], [1], [0, 0, 1, 1], [], []>} : vector<8x32xf32>, vector<32x48xf32>, vector<8x48xf32> -> vector<8x48xf32>
    %51 = vector.extract_strided_slice %50 {offsets = [0, 0], sizes = [8, 16], strides = [1, 1]} : vector<8x48xf32> to vector<8x16xf32>
    %52 = vector.extract_strided_slice %50 {offsets = [0, 16], sizes = [8, 32], strides = [1, 1]} : vector<8x48xf32> to vector<8x32xf32>
    %53 = vector.shape_cast %51 : vector<8x16xf32> to vector<8x1x16xf32>
    %c0_26 = arith.constant 0 : index
    %c0_27 = arith.constant 0 : index
    %c0_28 = arith.constant 0 : index
    %54 = vector.load %arg4[%c0_26, %c0_27, %c0_28] : memref<8x8x16xf32, #tpu.memory_space<vmem>>, vector<8x8x16xf32>
    %55 = vector.broadcast %53 : vector<8x1x16xf32> to vector<8x8x16xf32>
    %56 = arith.addf %55, %54 : vector<8x8x16xf32>
    %cst_29 = arith.constant 0.000000e+00 : f32
    %57 = vector.broadcast %cst_29 : f32 to vector<8x8x16xf32>
    %58 = arith.maximumf %56, %57 : vector<8x8x16xf32>
    %cst_30 = arith.constant dense<0xFF800000> : vector<8x16xf32>
    %59 = vector.multi_reduction <maximumf>, %58, %cst_30 [1] : vector<8x8x16xf32> to vector<8x16xf32>
    %60 = vector.shape_cast %59 : vector<8x16xf32> to vector<8x1x16xf32>
    %61 = vector.broadcast %60 : vector<8x1x16xf32> to vector<8x8x16xf32>
    %62 = arith.subf %58, %61 : vector<8x8x16xf32>
    %63 = math.exp %62 : vector<8x8x16xf32>
    %cst_31 = arith.constant dense<0.000000e+00> : vector<8x16xf32>
    %64 = vector.multi_reduction <add>, %63, %cst_31 [1] : vector<8x8x16xf32> to vector<8x16xf32>
    %65 = vector.shape_cast %64 : vector<8x16xf32> to vector<8x1x16xf32>
    %66 = tpu.reciprocal %65 {approx = true} : vector<8x1x16xf32> -> vector<8x1x16xf32>
    %67 = arith.mulf %65, %66 : vector<8x1x16xf32>
    %cst_32 = arith.constant 2.000000e+00 : f32
    %68 = vector.broadcast %cst_32 : f32 to vector<8x1x16xf32>
    %69 = arith.subf %68, %67 : vector<8x1x16xf32>
    %70 = arith.mulf %66, %69 : vector<8x1x16xf32>
    %c0_33 = arith.constant 0 : index
    %c0_34 = arith.constant 0 : index
    %c0_35 = arith.constant 0 : index
    %71 = vector.load %arg3[%c0_33, %c0_34, %c0_35] : memref<8x8x16xf32, #tpu.memory_space<vmem>>, vector<8x8x16xf32>
    %72 = vector.broadcast %70 : vector<8x1x16xf32> to vector<8x8x16xf32>
    %73 = arith.mulf %63, %72 : vector<8x8x16xf32>
    %74 = arith.mulf %71, %73 : vector<8x8x16xf32>
    %cst_36 = arith.constant dense<0.000000e+00> : vector<8x16xf32>
    %75 = vector.multi_reduction <add>, %74, %cst_36 [1] : vector<8x8x16xf32> to vector<8x16xf32>
    %c0_37 = arith.constant 0 : index
    %c0_38 = arith.constant 0 : index
    %76 = vector.load %arg11[%c0_37, %c0_38] : memref<16x32xf32, #tpu.memory_space<vmem>>, vector<16x32xf32>
    %cst_39 = arith.constant dense<0.000000e+00> : vector<8x32xf32>
    %77 = tpu.matmul %75, %76, %cst_39 {dimension_numbers = #tpu.dot_dimension_numbers<[1], [0], [0], [1], [0, 0, 1, 1], [], []>} : vector<8x16xf32>, vector<16x32xf32>, vector<8x32xf32> -> vector<8x32xf32>
    %78 = arith.addf %52, %77 : vector<8x32xf32>
    %79 = math.tanh %78 : vector<8x32xf32>
    %c0_40 = arith.constant 0 : index
    %c0_41 = arith.constant 0 : index
    %80 = vector.load %arg12[%c0_40, %c0_41] : memref<32x8xf32, #tpu.memory_space<vmem>>, vector<32x8xf32>
    %cst_42 = arith.constant dense<0.000000e+00> : vector<8x8xf32>
    %81 = tpu.matmul %79, %80, %cst_42 {dimension_numbers = #tpu.dot_dimension_numbers<[1], [0], [0], [1], [0, 0, 1, 1], [], []>} : vector<8x32xf32>, vector<32x8xf32>, vector<8x8xf32> -> vector<8x8xf32>
    %c0_43 = arith.constant 0 : index
    %c0_44 = arith.constant 0 : index
    %82 = vector.load %arg15[%c0_43, %c0_44] : memref<8x32xf32, #tpu.memory_space<vmem>>, vector<8x32xf32>
    tpu.vector_store %arg15[%c0_43, %c0_44], %48 {strides = array<i32>} : memref<8x32xf32, #tpu.memory_space<vmem>>, vector<8x32xf32>,
    %83 = arith.index_cast %arg0 : i32 to index
    %c0_45 = arith.constant 0 : index
    %c0_46 = arith.constant 0 : index
    %84 = vector.load %arg13[%83, %c0_45, %c0_46] : memref<1x8x32xf32, #tpu.memory_space<vmem>>, vector<1x8x32xf32>
    %85 = vector.shape_cast %84 : vector<1x8x32xf32> to vector<8x32xf32>
    %86 = vector.shape_cast %48 : vector<8x32xf32> to vector<1x8x32xf32>
    tpu.vector_store %arg13[%83, %c0_45, %c0_46], %86 {strides = array<i32>} : memref<1x8x32xf32, #tpu.memory_space<vmem>>, vector<1x8x32xf32>,
    %87 = arith.index_cast %arg0 : i32 to index
    %c0_47 = arith.constant 0 : index
    %c0_48 = arith.constant 0 : index
    %88 = vector.load %arg14[%87, %c0_47, %c0_48] : memref<1x8x8xf32, #tpu.memory_space<vmem>>, vector<1x8x8xf32>
    %89 = vector.shape_cast %88 : vector<1x8x8xf32> to vector<8x8xf32>
    %90 = vector.shape_cast %81 : vector<8x8xf32> to vector<1x8x8xf32>
    tpu.vector_store %arg14[%87, %c0_47, %c0_48], %90 {strides = array<i32>} : memref<1x8x8xf32, #tpu.memory_space<vmem>>, vector<1x8x8xf32>,
    return
  }
  func.func @transform_0(%arg0: i32) -> (i32, i32, i32) {
    %c0_i32 = arith.constant 0 : i32
    %c0_i32_0 = arith.constant 0 : i32
    %c0_i32_1 = arith.constant 0 : i32
    return %arg0, %c0_i32, %c0_i32_0 : i32, i32, i32
  }
  func.func @transform_1(%arg0: i32) -> (i32, i32) {
    %c0_i32 = arith.constant 0 : i32
    %c0_i32_0 = arith.constant 0 : i32
    %c0_i32_1 = arith.constant 0 : i32
    return %c0_i32, %c0_i32_0 : i32, i32
  }
  func.func @transform_2(%arg0: i32) -> (i32, i32, i32) {
    %c0_i32 = arith.constant 0 : i32
    %c0_i32_0 = arith.constant 0 : i32
    %c0_i32_1 = arith.constant 0 : i32
    %c0_i32_2 = arith.constant 0 : i32
    return %c0_i32, %c0_i32_0, %c0_i32_1 : i32, i32, i32
  }
  func.func @transform_3(%arg0: i32) -> (i32, i32, i32) {
    %c0_i32 = arith.constant 0 : i32
    %c0_i32_0 = arith.constant 0 : i32
    %c0_i32_1 = arith.constant 0 : i32
    %c0_i32_2 = arith.constant 0 : i32
    return %c0_i32, %c0_i32_0, %c0_i32_1 : i32, i32, i32
  }
  func.func @transform_4(%arg0: i32) -> (i32, i32) {
    %c0_i32 = arith.constant 0 : i32
    %c0_i32_0 = arith.constant 0 : i32
    %c0_i32_1 = arith.constant 0 : i32
    return %c0_i32, %c0_i32_0 : i32, i32
  }
  func.func @transform_5(%arg0: i32) -> (i32, i32) {
    %c0_i32 = arith.constant 0 : i32
    %c0_i32_0 = arith.constant 0 : i32
    %c0_i32_1 = arith.constant 0 : i32
    return %c0_i32, %c0_i32_0 : i32, i32
  }
  func.func @transform_6(%arg0: i32) -> (i32, i32) {
    %c0_i32 = arith.constant 0 : i32
    %c0_i32_0 = arith.constant 0 : i32
    %c0_i32_1 = arith.constant 0 : i32
    return %c0_i32, %c0_i32_0 : i32, i32
  }
  func.func @transform_7(%arg0: i32) -> (i32, i32) {
    %c0_i32 = arith.constant 0 : i32
    %c0_i32_0 = arith.constant 0 : i32
    %c0_i32_1 = arith.constant 0 : i32
    return %c0_i32, %c0_i32_0 : i32, i32
  }
  func.func @transform_8(%arg0: i32) -> (i32, i32) {
    %c0_i32 = arith.constant 0 : i32
    %c0_i32_0 = arith.constant 0 : i32
    %c0_i32_1 = arith.constant 0 : i32
    return %c0_i32, %c0_i32_0 : i32, i32
  }
  func.func @transform_9(%arg0: i32) -> (i32, i32) {
    %c0_i32 = arith.constant 0 : i32
    %c0_i32_0 = arith.constant 0 : i32
    %c0_i32_1 = arith.constant 0 : i32
    return %c0_i32, %c0_i32_0 : i32, i32
  }
  func.func @transform_10(%arg0: i32) -> (i32, i32) {
    %c0_i32 = arith.constant 0 : i32
    %c0_i32_0 = arith.constant 0 : i32
    %c0_i32_1 = arith.constant 0 : i32
    return %c0_i32, %c0_i32_0 : i32, i32
  }
  func.func @transform_11(%arg0: i32) -> (i32, i32) {
    %c0_i32 = arith.constant 0 : i32
    %c0_i32_0 = arith.constant 0 : i32
    %c0_i32_1 = arith.constant 0 : i32
    return %c0_i32, %c0_i32_0 : i32, i32
  }
  func.func @transform_12(%arg0: i32) -> (i32, i32, i32) {
    %c0_i32 = arith.constant 0 : i32
    %c0_i32_0 = arith.constant 0 : i32
    %c0_i32_1 = arith.constant 0 : i32
    %c0_i32_2 = arith.constant 0 : i32
    return %c0_i32, %c0_i32_0, %c0_i32_1 : i32, i32, i32
  }
  func.func @transform_13(%arg0: i32) -> (i32, i32, i32) {
    %c0_i32 = arith.constant 0 : i32
    %c0_i32_0 = arith.constant 0 : i32
    %c0_i32_1 = arith.constant 0 : i32
    %c0_i32_2 = arith.constant 0 : i32
    return %c0_i32, %c0_i32_0, %c0_i32_1 : i32, i32, i32
  }
}

</mosaic_0001>

<llo_original>
// kernel: lfads_generator_source_attn_rollout.1
$region0: #{lfads_generator_source_attn_rollout.1}
  #allocation0 [shape = 'u32[]', space=smem, size = 0x4, offset = 0x4, fixed_abs, tag = 'smem constant byte address 0x4 - core index']
  #allocation1 [shape = 'u32[144,128]{1,0:T(1,128)}', space=vmem, size = 0x12000, scoped, tag = 'internal scratch']
  #allocation2 [shape = 'f32[8,32]{1,0:T(8,128)}', space=vmem, size = 0x1000, scoped, tag = 'scratch operand']
  %s0 = inlined_call_operand.vmem [shape: f32[1,8,16], index: 0, kind: input, shape index: {}]
  %s1 = inlined_call_operand.vmem [shape: f32[8,32], index: 1, kind: input, shape index: {}]
  %s2 = inlined_call_operand.vmem [shape: f32[8,8,16], index: 2, kind: input, shape index: {}]
  %s3 = inlined_call_operand.vmem [shape: f32[8,8,16], index: 3, kind: input, shape index: {}]
  %s4 = inlined_call_operand.vmem [shape: f32[16,96], index: 4, kind: input, shape index: {}]
  %s5 = inlined_call_operand.vmem [shape: f32[32,64], index: 5, kind: input, shape index: {}]
  %s6 = inlined_call_operand.vmem [shape: f32[1,64], index: 6, kind: input, shape index: {}]
  %s7 = inlined_call_operand.vmem [shape: f32[32,32], index: 7, kind: input, shape index: {}]
  %s8 = inlined_call_operand.vmem [shape: f32[1,32], index: 8, kind: input, shape index: {}]
  %s9 = inlined_call_operand.vmem [shape: f32[32,48], index: 9, kind: input, shape index: {}]
  %s10 = inlined_call_operand.vmem [shape: f32[16,32], index: 10, kind: input, shape index: {}]
  %s11 = inlined_call_operand.vmem [shape: f32[32,8], index: 11, kind: input, shape index: {}]
  %s12 = inlined_call_operand.hbm [shape: f32[1,8,32], index: 12, kind: output, shape index: {0}]
  %s13 = inlined_call_operand.hbm [shape: f32[1,8,8], index: 13, kind: output, shape index: {1}]
  %14 = xla_tuple %s12, %s13
  %s15 = sld [smem:[#allocation0]]
  $region70: #{lfads_generator_source_attn_rollout.1} parent=0
    _
  %s17 = ssub.s32 1, %s15
  %s18 = scalar_select 0, %s17, %s15
  $region1: #{lfads_generator_source_attn_rollout.1} parent=0
    #allocation3 [shape = 'u8[4096]{0}', space=vmem, size = 0x1000, scoped, tag = 'output window, operand 0, single buffered']
    #allocation4 [shape = 's32[1]{0}', space=sflag, size = 0x4, scoped, tag = 'scoped memory for lfads_generator_source_attn_rollout.1']
    #allocation5 [shape = 'u8[4096]{0}', space=vmem, size = 0x1000, scoped, tag = 'output window, operand 1, single buffered']
    #allocation6 [shape = 's32[1]{0}', space=sflag, size = 0x4, scoped, tag = 'scoped memory for lfads_generator_source_attn_rollout.1']
    %19 = vsyncpa [#allocation4], 0
    %20 = vsyncpa [#allocation6], 0
    // Predicated region
    $region2: #{lfads_generator_source_attn_rollout.1} parent=1 // pred_check
      _
    $region3: #{lfads_generator_source_attn_rollout.1} parent=1 // pred_check_branch
      %22 = sbr.rel (0) target = $region5
    $region4: #{lfads_generator_source_attn_rollout.1} parent=1 // pred_region
      _
    $region5: #{lfads_generator_source_attn_rollout.1} parent=1 // pred_fallthru
      _
    // Predicated region
    $region6: #{lfads_generator_source_attn_rollout.1} parent=1 // pred_check
      _
    $region7: #{lfads_generator_source_attn_rollout.1} parent=1 // pred_check_branch
      %24 = sbr.rel (0) target = $region9
    $region8: #{lfads_generator_source_attn_rollout.1} parent=1 // pred_region
      _
    $region9: #{lfads_generator_source_attn_rollout.1} parent=1 // pred_fallthru
      _
    // Predicated region
    $region10: #{lfads_generator_source_attn_rollout.1} parent=1 // pred_check
      _
    $region11: #{lfads_generator_source_attn_rollout.1} parent=1 // pred_check_branch
      %26 = sbr.rel (0) target = $region13
    $region12: #{lfads_generator_source_attn_rollout.1} parent=1 // pred_region
      _
    $region13: #{lfads_generator_source_attn_rollout.1} parent=1 // pred_fallthru
      _
    // Predicated region
    $region14: #{lfads_generator_source_attn_rollout.1} parent=1 // pred_check
      _
    $region15: #{lfads_generator_source_attn_rollout.1} parent=1 // pred_check_branch
      %28 = sbr.rel (0) target = $region17
    $region16: #{lfads_generator_source_attn_rollout.1} parent=1 // pred_region
      _
    $region17: #{lfads_generator_source_attn_rollout.1} parent=1 // pred_fallthru
      _
    // Predicated region
    $region18: #{lfads_generator_source_attn_rollout.1} parent=1 // pred_check
      _
    $region19: #{lfads_generator_source_attn_rollout.1} parent=1 // pred_check_branch
      %30 = sbr.rel (0) target = $region21
    $region20: #{lfads_generator_source_attn_rollout.1} parent=1 // pred_region
      _
    $region21: #{lfads_generator_source_attn_rollout.1} parent=1 // pred_fallthru
      _
    // Predicated region
    $region22: #{lfads_generator_source_attn_rollout.1} parent=1 // pred_check
      _
    $region23: #{lfads_generator_source_attn_rollout.1} parent=1 // pred_check_branch
      %32 = sbr.rel (0) target = $region25
    $region24: #{lfads_generator_source_attn_rollout.1} parent=1 // pred_region
      _
    $region25: #{lfads_generator_source_attn_rollout.1} parent=1 // pred_fallthru
      _
    // Predicated region
    $region26: #{lfads_generator_source_attn_rollout.1} parent=1 // pred_check
      _
    $region27: #{lfads_generator_source_attn_rollout.1} parent=1 // pred_check_branch
      %34 = sbr.rel (0) target = $region29
    $region28: #{lfads_generator_source_attn_rollout.1} parent=1 // pred_region
      _
    $region29: #{lfads_generator_source_attn_rollout.1} parent=1 // pred_fallthru
      _
    // Predicated region
    $region30: #{lfads_generator_source_attn_rollout.1} parent=1 // pred_check
      _
    $region31: #{lfads_generator_source_attn_rollout.1} parent=1 // pred_check_branch
      %36 = sbr.rel (0) target = $region33
    $region32: #{lfads_generator_source_attn_rollout.1} parent=1 // pred_region
      _
    $region33: #{lfads_generator_source_attn_rollout.1} parent=1 // pred_fallthru
      _
    // Predicated region
    $region34: #{lfads_generator_source_attn_rollout.1} parent=1 // pred_check
      _
    $region35: #{lfads_generator_source_attn_rollout.1} parent=1 // pred_check_branch
      %38 = sbr.rel (0) target = $region37
    $region36: #{lfads_generator_source_attn_rollout.1} parent=1 // pred_region
      _
    $region37: #{lfads_generator_source_attn_rollout.1} parent=1 // pred_fallthru
      _
    // Predicated region
    $region38: #{lfads_generator_source_attn_rollout.1} parent=1 // pred_check
      _
    $region39: #{lfads_generator_source_attn_rollout.1} parent=1 // pred_check_branch
      %40 = sbr.rel (0) target = $region41
    $region40: #{lfads_generator_source_attn_rollout.1} parent=1 // pred_region
      _
    $region41: #{lfads_generator_source_attn_rollout.1} parent=1 // pred_fallthru
      _
    // Predicated region
    $region42: #{lfads_generator_source_attn_rollout.1} parent=1 // pred_check
      _
    $region43: #{lfads_generator_source_attn_rollout.1} parent=1 // pred_check_branch
      %42 = sbr.rel (0) target = $region45
    $region44: #{lfads_generator_source_attn_rollout.1} parent=1 // pred_region
      _
    $region45: #{lfads_generator_source_attn_rollout.1} parent=1 // pred_fallthru
      _
    // Predicated region
    $region46: #{lfads_generator_source_attn_rollout.1} parent=1 // pred_check
      _
    $region47: #{lfads_generator_source_attn_rollout.1} parent=1 // pred_check_branch
      %44 = sbr.rel (0) target = $region49
    $region48: #{lfads_generator_source_attn_rollout.1} parent=1 // pred_region
      _
    $region49: #{lfads_generator_source_attn_rollout.1} parent=1 // pred_fallthru
      _
    %p45 = scmp.eq.s32.totalorder 0, 0
    // Predicated region
    $region50: #{lfads_generator_source_attn_rollout.1} parent=1 // pred_check
      %p46 = pneg %p45
    $region51: #{lfads_generator_source_attn_rollout.1} parent=1 // pred_check_branch
      %48 = sbr.rel (%p46) target = $region53
    $region52: #{lfads_generator_source_attn_rollout.1} parent=1 // pred_region
      %v49 = vld [vmem:[%s1] sm:$0xff]
      %vm50 = vcmask 261120
      %51 = vst.msk [vmem:[#allocation2] sm:$0xff] %vm50, %v49
    $region53: #{lfads_generator_source_attn_rollout.1} parent=1 // pred_fallthru
      _
    %v52 = vld [vmem:[%s0] sm:$0xff]
    %v53 = vld [vmem:[#allocation2] sm:$0xff]
    %v54 = vld [vmem:[%s4] sm:$0xff]
    %v55 = vld [vmem:[%s4 + $0x8] sm:$0xff]
    %vm56 = vcmask 130048
    %v58 = vsel %vm56, %v52, 0
    %60 = vmatprep.subr.mxu0 0.0
    %61 = vmatpush1.msra.mxu0 0.0
    %62 = vmatprep.subr.mxu0 0.0
    %63 = vmatpush1.msra.mxu0 0.0
    %64 = vmatprep.subr.mxu0 0.0
    %65 = vmatpush1.msra.mxu0 0.0
    %66 = vmatprep.subr.mxu0 0.0
    %67 = vmatpush1.msra.mxu0 0.0
    %68 = vmatprep.subr.mxu0 0.0
    %69 = vmatpush1.msra.mxu0 0.0
    %70 = vmatprep.subr.mxu0 0.0
    %71 = vmatpush1.msra.mxu0 0.0
    %72 = vmatprep.subr.mxu0 0.0
    %73 = vmatpush1.msra.mxu0 0.0
    %74 = vmatprep.subr.mxu0 0.0
    %75 = vmatpush1.msra.mxu0 0.0
    %76 = vmatprep.subr.mxu0 0.0
    %77 = vmatpush1.msra.mxu0 0.0
    %78 = vmatprep.subr.mxu0 0.0
    %79 = vmatpush1.msra.mxu0 0.0
    %80 = vmatprep.subr.mxu0 0.0
    %81 = vmatpush1.msra.mxu0 0.0
    %82 = vmatprep.subr.mxu0 0.0
    %83 = vmatpush1.msra.mxu0 0.0
    %84 = vmatprep.subr.mxu0 0.0
    %85 = vmatpush1.msra.mxu0 0.0
    %86 = vmatprep.subr.mxu0 0.0
    %87 = vmatpush1.msra.mxu0 0.0
    %88 = vmatprep.subr.mxu0 0.0
    %89 = vmatpush1.msra.mxu0 %v55
    %90 = vmatprep.subr.mxu0 0.0
    %91 = vmatpush1.msra.mxu0 %v54
    %92 = vmatprep.subr.mxu0 0.0
    %93 = vmatpush2.msra.mxu0 0.0
    %94 = vmatprep.subr.mxu0 0.0
    %95 = vmatpush2.msra.mxu0 0.0
    %96 = vmatprep.subr.mxu0 0.0
    %97 = vmatpush2.msra.mxu0 0.0
    %98 = vmatprep.subr.mxu0 0.0
    %99 = vmatpush2.msra.mxu0 0.0
    %100 = vmatprep.subr.mxu0 0.0
    %101 = vmatpush2.msra.mxu0 0.0
    %102 = vmatprep.subr.mxu0 0.0
    %103 = vmatpush2.msra.mxu0 0.0
    %104 = vmatprep.subr.mxu0 0.0
    %105 = vmatpush2.msra.mxu0 0.0
    %106 = vmatprep.subr.mxu0 0.0
    %107 = vmatpush2.msra.mxu0 0.0
    %108 = vmatprep.subr.mxu0 0.0
    %109 = vmatpush2.msra.mxu0 0.0
    %110 = vmatprep.subr.mxu0 0.0
    %111 = vmatpush2.msra.mxu0 0.0
    %112 = vmatprep.subr.mxu0 0.0
    %113 = vmatpush2.msra.mxu0 0.0
    %114 = vmatprep.subr.mxu0 0.0
    %115 = vmatpush2.msra.mxu0 0.0
    %116 = vmatprep.subr.mxu0 0.0
    %117 = vmatpush2.msra.mxu0 0.0
    %118 = vmatprep.subr.mxu0 0.0
    %119 = vmatpush2.msra.mxu0 0.0
    %120 = vmatprep.subr.mxu0 0.0
    %121 = vmatpush2.msra.mxu0 0.0
    %122 = vmatprep.subr.mxu0 0.0
    %123 = vmatpush2.msra.mxu0 0.0
    %124 = vmatprep.mubr.f32.mxu0 0.0
    %125 = vmatmul.mubr.f32.gmra.mxu0 %v58
    %v126 = vpop.f32.mrf.mxu0
    %v127 = vadd.f32 0.0, %v126
    %v128 = vpop.f32.mrf.mxu0
    %129 = vdwg.mxu0
    %v130 = vld [vmem:[%s5] sm:$0xff]
    %v131 = vld [vmem:[%s5 + $0x8] sm:$0xff]
    %v132 = vld [vmem:[%s5 + $0x10] sm:$0xff]
    %v133 = vld [vmem:[%s5 + $0x18] sm:$0xff]
    %v134 = vld [vmem:[%s6] sm:$0x1]
    %v136 = vlaneseq
    %v137 = vshrl.u32 %v136, 7
    %v138 = vsub.s32 0, %v137
    %v139 = vrot.slane %v134, %v138
    %vm141 = vcmask 261120
    %v143 = vsel %vm141, %v53, 0
    %145 = vmatprep.subr.mxu0 0.0
    %146 = vmatpush1.msra.mxu0 0.0
    %147 = vmatprep.subr.mxu0 0.0
    %148 = vmatpush1.msra.mxu0 0.0
    %149 = vmatprep.subr.mxu0 0.0
    %150 = vmatpush1.msra.mxu0 0.0
    %151 = vmatprep.subr.mxu0 0.0
    %152 = vmatpush1.msra.mxu0 0.0
    %153 = vmatprep.subr.mxu0 0.0
    %154 = vmatpush1.msra.mxu0 0.0
    %155 = vmatprep.subr.mxu0 0.0
    %156 = vmatpush1.msra.mxu0 0.0
    %157 = vmatprep.subr.mxu0 0.0
    %158 = vmatpush1.msra.mxu0 0.0
    %159 = vmatprep.subr.mxu0 0.0
    %160 = vmatpush1.msra.mxu0 0.0
    %161 = vmatprep.subr.mxu0 0.0
    %162 = vmatpush1.msra.mxu0 0.0
    %163 = vmatprep.subr.mxu0 0.0
    %164 = vmatpush1.msra.mxu0 0.0
    %165 = vmatprep.subr.mxu0 0.0
    %166 = vmatpush1.msra.mxu0 0.0
    %167 = vmatprep.subr.mxu0 0.0
    %168 = vmatpush1.msra.mxu0 0.0
    %169 = vmatprep.subr.mxu0 0.0
    %170 = vmatpush1.msra.mxu0 %v133
    %171 = vmatprep.subr.mxu0 0.0
    %172 = vmatpush1.msra.mxu0 %v132
    %173 = vmatprep.subr.mxu0 0.0
    %174 = vmatpush1.msra.mxu0 %v131
    %175 = vmatprep.subr.mxu0 0.0
    %176 = vmatpush1.msra.mxu0 %v130
    %177 = vmatprep.subr.mxu0 0.0
    %178 = vmatpush2.msra.mxu0 0.0
    %179 = vmatprep.subr.mxu0 0.0
    %180 = vmatpush2.msra.mxu0 0.0
    %181 = vmatprep.subr.mxu0 0.0
    %182 = vmatpush2.msra.mxu0 0.0
    %183 = vmatprep.subr.mxu0 0.0
    %184 = vmatpush2.msra.mxu0 0.0
    %185 = vmatprep.subr.mxu0 0.0
    %186 = vmatpush2.msra.mxu0 0.0
    %187 = vmatprep.subr.mxu0 0.0
    %188 = vmatpush2.msra.mxu0 0.0
    %189 = vmatprep.subr.mxu0 0.0
    %190 = vmatpush2.msra.mxu0 0.0
    %191 = vmatprep.subr.mxu0 0.0
    %192 = vmatpush2.msra.mxu0 0.0
    %193 = vmatprep.subr.mxu0 0.0
    %194 = vmatpush2.msra.mxu0 0.0
    %195 = vmatprep.subr.mxu0 0.0
    %196 = vmatpush2.msra.mxu0 0.0
    %197 = vmatprep.subr.mxu0 0.0
    %198 = vmatpush2.msra.mxu0 0.0
    %199 = vmatprep.subr.mxu0 0.0
    %200 = vmatpush2.msra.mxu0 0.0
    %201 = vmatprep.subr.mxu0 0.0
    %202 = vmatpush2.msra.mxu0 0.0
    %203 = vmatprep.subr.mxu0 0.0
    %204 = vmatpush2.msra.mxu0 0.0
    %205 = vmatprep.subr.mxu0 0.0
    %206 = vmatpush2.msra.mxu0 0.0
    %207 = vmatprep.subr.mxu0 0.0
    %208 = vmatpush2.msra.mxu0 0.0
    %209 = vmatprep.mubr.f32.mxu0 0.0
    %210 = vmatmul.mubr.f32.gmra.mxu0 %v143
    %v211 = vpop.f32.mrf.mxu0
    %v212 = vadd.f32 %v139, %v211
    %v213 = vpop.f32.mrf.mxu0
    %214 = vdwg.mxu0
    %v215 = vadd.f32 %v127, %v212
    %v216 = vxor.u32 %v215, 2147483648
    %v217 = vmul.f32 %v216, 1.442695
    %v218 = vpow.pop %v217
    %v219 = vadd.f32 %v218, 1.0
    %v220 = vrcp.pop %v219
    %v221 = vmul.f32 1.0, %v220
    %v222 = vadd.f32 %v215, 1.0
    %v223 = vxor.u32 %v222, 2147483648
    %v224 = vmul.f32 %v223, 1.442695
    %v225 = vpow.pop %v224
    %v226 = vadd.f32 %v225, 1.0
    %v227 = vrcp.pop %v226
    %v228 = vmul.f32 1.0, %v227
    %v229 = vmul.f32 %v221, %v53
    %v230 = vld [vmem:[%s7] sm:$0xff]
    %v231 = vld [vmem:[%s7 + $0x8] sm:$0xff]
    %v232 = vld [vmem:[%s7 + $0x10] sm:$0xff]
    %v233 = vld [vmem:[%s7 + $0x18] sm:$0xff]
    %v235 = vsel %vm141, %v229, 0
    %237 = vmatprep.subr.mxu0 0.0
    %238 = vmatpush1.msra.mxu0 0.0
    %239 = vmatprep.subr.mxu0 0.0
    %240 = vmatpush1.msra.mxu0 0.0
    %241 = vmatprep.subr.mxu0 0.0
    %242 = vmatpush1.msra.mxu0 0.0
    %243 = vmatprep.subr.mxu0 0.0
    %244 = vmatpush1.msra.mxu0 0.0
    %245 = vmatprep.subr.mxu0 0.0
    %246 = vmatpush1.msra.mxu0 0.0
    %247 = vmatprep.subr.mxu0 0.0
    %248 = vmatpush1.msra.mxu0 0.0
    %249 = vmatprep.subr.mxu0 0.0
    %250 = vmatpush1.msra.mxu0 0.0
    %251 = vmatprep.subr.mxu0 0.0
    %252 = vmatpush1.msra.mxu0 0.0
    %253 = vmatprep.subr.mxu0 0.0
    %254 = vmatpush1.msra.mxu0 0.0
    %255 = vmatprep.subr.mxu0 0.0
    %256 = vmatpush1.msra.mxu0 0.0
    %257 = vmatprep.subr.mxu0 0.0
    %258 = vmatpush1.msra.mxu0 0.0
    %259 = vmatprep.subr.mxu0 0.0
    %260 = vmatpush1.msra.mxu0 0.0
    %261 = vmatprep.subr.mxu0 0.0
    %262 = vmatpush1.msra.mxu0 %v233
    %263 = vmatprep.subr.mxu0 0.0
    %264 = vmatpush1.msra.mxu0 %v232
    %265 = vmatprep.subr.mxu0 0.0
    %266 = vmatpush1.msra.mxu0 %v231
    %267 = vmatprep.subr.mxu0 0.0
    %268 = vmatpush1.msra.mxu0 %v230
    %269 = vmatprep.subr.mxu0 0.0
    %270 = vmatpush2.msra.mxu0 0.0
    %271 = vmatprep.subr.mxu0 0.0
    %272 = vmatpush2.msra.mxu0 0.0
    %273 = vmatprep.subr.mxu0 0.0
    %274 = vmatpush2.msra.mxu0 0.0
    %275 = vmatprep.subr.mxu0 0.0
    %276 = vmatpush2.msra.mxu0 0.0
    %277 = vmatprep.subr.mxu0 0.0
    %278 = vmatpush2.msra.mxu0 0.0
    %279 = vmatprep.subr.mxu0 0.0
    %280 = vmatpush2.msra.mxu0 0.0
    %281 = vmatprep.subr.mxu0 0.0
    %282 = vmatpush2.msra.mxu0 0.0
    %283 = vmatprep.subr.mxu0 0.0
    %284 = vmatpush2.msra.mxu0 0.0
    %285 = vmatprep.subr.mxu0 0.0
    %286 = vmatpush2.msra.mxu0 0.0
    %287 = vmatprep.subr.mxu0 0.0
    %288 = vmatpush2.msra.mxu0 0.0
    %289 = vmatprep.subr.mxu0 0.0
    %290 = vmatpush2.msra.mxu0 0.0
    %291 = vmatprep.subr.mxu0 0.0
    %292 = vmatpush2.msra.mxu0 0.0
    %293 = vmatprep.subr.mxu0 0.0
    %294 = vmatpush2.msra.mxu0 0.0
    %295 = vmatprep.subr.mxu0 0.0
    %296 = vmatpush2.msra.mxu0 0.0
    %297 = vmatprep.subr.mxu0 0.0
    %298 = vmatpush2.msra.mxu0 0.0
    %299 = vmatprep.subr.mxu0 0.0
    %300 = vmatpush2.msra.mxu0 0.0
    %301 = vmatprep.mubr.f32.mxu0 0.0
    %302 = vmatmul.mubr.f32.gmra.mxu0 %v235
    %v303 = vpop.f32.mrf.mxu0
    %v304 = vadd.f32 0.0, %v303
    %v305 = vpop.f32.mrf.mxu0
    %306 = vdwg.mxu0
    %308 = vrot.lane.b32.xlu0 %v304, 64
    %v309 = vpop.permute.xlu0 %308
    %v311 = vadd.f32 %v127, %v309
    %v312 = vld [vmem:[%s8] sm:$0x1]
    %v314 = vlaneseq
    %v315 = vshrl.u32 %v314, 7
    %v316 = vsub.s32 0, %v315
    %v317 = vrot.slane %v312, %v316
    %318 = vrot.lane.b32.xlu0 %v317, 64
    %v319 = vpop.permute.xlu0 %318
    %v321 = vadd.f32 %v311, %v319
    %v322 = vtanh.pop %v321
    %323 = vrot.lane.b32.xlu0 %v53, 32
    %v324 = vpop.permute.xlu0 %323
    %v326 = vmul.f32 %v228, %v324
    %v327 = vsub.f32 1.0, %v228
    %329 = vrot.lane.b32.xlu0 %v322, 96
    %v330 = vpop.permute.xlu0 %329
    %v332 = vmul.f32 %v327, %v330
    %v333 = vadd.f32 %v326, %v332
    %v334 = vmax.f32 %v333, -5.0
    %v335 = vmin.f32 %v334, 5.0
    %v336 = vld [vmem:[%s9] sm:$0xff]
    %v337 = vld [vmem:[%s9 + $0x8] sm:$0xff]
    %v338 = vld [vmem:[%s9 + $0x10] sm:$0xff]
    %v339 = vld [vmem:[%s9 + $0x18] sm:$0xff]
    %341 = vrot.lane.b32.xlu0 %v335, 96
    %v342 = vpop.permute.xlu0 %341
    %v343 = vsel %vm141, %v342, 0
    %345 = vmatprep.subr.mxu0 0.0
    %346 = vmatpush1.msra.mxu0 0.0
    %347 = vmatprep.subr.mxu0 0.0
    %348 = vmatpush1.msra.mxu0 0.0
    %349 = vmatprep.subr.mxu0 0.0
    %350 = vmatpush1.msra.mxu0 0.0
    %351 = vmatprep.subr.mxu0 0.0
    %352 = vmatpush1.msra.mxu0 0.0
    %353 = vmatprep.subr.mxu0 0.0
    %354 = vmatpush1.msra.mxu0 0.0
    %355 = vmatprep.subr.mxu0 0.0
    %356 = vmatpush1.msra.mxu0 0.0
    %357 = vmatprep.subr.mxu0 0.0
    %358 = vmatpush1.msra.mxu0 0.0
    %359 = vmatprep.subr.mxu0 0.0
    %360 = vmatpush1.msra.mxu0 0.0
    %361 = vmatprep.subr.mxu0 0.0
    %362 = vmatpush1.msra.mxu0 0.0
    %363 = vmatprep.subr.mxu0 0.0
    %364 = vmatpush1.msra.mxu0 0.0
    %365 = vmatprep.subr.mxu0 0.0
    %366 = vmatpush1.msra.mxu0 0.0
    %367 = vmatprep.subr.mxu0 0.0
    %368 = vmatpush1.msra.mxu0 0.0
    %369 = vmatprep.subr.mxu0 0.0
    %370 = vmatpush1.msra.mxu0 %v339
    %371 = vmatprep.subr.mxu0 0.0
    %372 = vmatpush1.msra.mxu0 %v338
    %373 = vmatprep.subr.mxu0 0.0
    %374 = vmatpush1.msra.mxu0 %v337
    %375 = vmatprep.subr.mxu0 0.0
    %376 = vmatpush1.msra.mxu0 %v336
    %377 = vmatprep.subr.mxu0 0.0
    %378 = vmatpush2.msra.mxu0 0.0
    %379 = vmatprep.subr.mxu0 0.0
    %380 = vmatpush2.msra.mxu0 0.0
    %381 = vmatprep.subr.mxu0 0.0
    %382 = vmatpush2.msra.mxu0 0.0
    %383 = vmatprep.subr.mxu0 0.0
    %384 = vmatpush2.msra.mxu0 0.0
    %385 = vmatprep.subr.mxu0 0.0
    %386 = vmatpush2.msra.mxu0 0.0
    %387 = vmatprep.subr.mxu0 0.0
    %388 = vmatpush2.msra.mxu0 0.0
    %389 = vmatprep.subr.mxu0 0.0
    %390 = vmatpush2.msra.mxu0 0.0
    %391 = vmatprep.subr.mxu0 0.0
    %392 = vmatpush2.msra.mxu0 0.0
    %393 = vmatprep.subr.mxu0 0.0
    %394 = vmatpush2.msra.mxu0 0.0
    %395 = vmatprep.subr.mxu0 0.0
    %396 = vmatpush2.msra.mxu0 0.0
    %397 = vmatprep.subr.mxu0 0.0
    %398 = vmatpush2.msra.mxu0 0.0
    %399 = vmatprep.subr.mxu0 0.0
    %400 = vmatpush2.msra.mxu0 0.0
    %401 = vmatprep.subr.mxu0 0.0
    %402 = vmatpush2.msra.mxu0 0.0
    %403 = vmatprep.subr.mxu0 0.0
    %404 = vmatpush2.msra.mxu0 0.0
    %405 = vmatprep.subr.mxu0 0.0
    %406 = vmatpush2.msra.mxu0 0.0
    %407 = vmatprep.subr.mxu0 0.0
    %408 = vmatpush2.msra.mxu0 0.0
    %409 = vmatprep.mubr.f32.mxu0 0.0
    %410 = vmatmul.mubr.f32.gmra.mxu0 %v343
    %v411 = vpop.f32.mrf.mxu0
    %v412 = vadd.f32 0.0, %v411
    %v413 = vpop.f32.mrf.mxu0
    %414 = vdwg.mxu0
    %v416 = vcombine.high %v412, %v412
    %v418 = vunpack.c.l.s4 1966171168
    %v419 = vunpack.c.0.s8 %v418
    %v420 = vlaneseq
    %v421 = vshrl.u32 %v420, 7
    %v422 = vsub.s32 %v419, %v421
    %v423 = vrot.slane %v412, %v422
    %v425 = vunpack.c.l.s4 1966171168
    %v426 = vunpack.c.0.s8 %v425
    %v427 = vlaneseq
    %v428 = vshrl.u32 %v427, 7
    %v429 = vsub.s32 %v426, %v428
    %v430 = vrot.slane %v416, %v429
    %v431 = vcombine.high %v423, %v423
    %v432 = vcombine.high %v430, %v430
    %v434 = vunpack.c.l.s4 1966171168
    %v435 = vunpack.c.0.s8 %v434
    %v436 = vlaneseq
    %v437 = vshrl.u32 %v436, 7
    %v438 = vsub.s32 %v435, %v437
    %v439 = vrot.slane %v423, %v438
    %v441 = vunpack.c.l.s4 1966171168
    %v442 = vunpack.c.0.s8 %v441
    %v443 = vlaneseq
    %v444 = vshrl.u32 %v443, 7
    %v445 = vsub.s32 %v442, %v444
    %v446 = vrot.slane %v430, %v445
    %v448 = vunpack.c.l.s4 1966171168
    %v449 = vunpack.c.0.s8 %v448
    %v450 = vlaneseq
    %v451 = vshrl.u32 %v450, 7
    %v452 = vsub.s32 %v449, %v451
    %v453 = vrot.slane %v431, %v452
    %v455 = vunpack.c.l.s4 1966171168
    %v456 = vunpack.c.0.s8 %v455
    %v457 = vlaneseq
    %v458 = vshrl.u32 %v457, 7
    %v459 = vsub.s32 %v456, %v458
    %v460 = vrot.slane %v432, %v459
    %v461 = vcombine.high %v439, %v439
    %v462 = vcombine.high %v446, %v446
    %v463 = vcombine.high %v453, %v453
    %v464 = vcombine.high %v460, %v460
    %v465 = vld [vmem:[%s3] sm:$0xff]
    %v466 = vld [vmem:[%s3 + $0x8] sm:$0xff]
    %v467 = vld [vmem:[%s3 + $0x10] sm:$0xff]
    %v468 = vld [vmem:[%s3 + $0x18] sm:$0xff]
    %v469 = vld [vmem:[%s3 + $0x20] sm:$0xff]
    %v470 = vld [vmem:[%s3 + $0x28] sm:$0xff]
    %v471 = vld [vmem:[%s3 + $0x30] sm:$0xff]
    %v472 = vld [vmem:[%s3 + $0x38] sm:$0xff]
    %v473 = vlaneseq
    %v474 = vshrl.u32 %v473, 7
    %v475 = vsub.s32 0, %v474
    %v476 = vrot.slane %v439, %v475
    %v477 = vlaneseq
    %v478 = vshrl.u32 %v477, 7
    %v479 = vsub.s32 0, %v478
    %v480 = vrot.slane %v453, %v479
    %v481 = vlaneseq
    %v482 = vshrl.u32 %v481, 7
    %v483 = vsub.s32 0, %v482
    %v484 = vrot.slane %v461, %v483
    %v485 = vlaneseq
    %v486 = vshrl.u32 %v485, 7
    %v487 = vsub.s32 0, %v486
    %v488 = vrot.slane %v463, %v487
    %v489 = vlaneseq
    %v490 = vshrl.u32 %v489, 7
    %v491 = vsub.s32 0, %v490
    %v492 = vrot.slane %v446, %v491
    %v493 = vlaneseq
    %v494 = vshrl.u32 %v493, 7
    %v495 = vsub.s32 0, %v494
    %v496 = vrot.slane %v460, %v495
    %v497 = vlaneseq
    %v498 = vshrl.u32 %v497, 7
    %v499 = vsub.s32 0, %v498
    %v500 = vrot.slane %v462, %v499
    %v501 = vlaneseq
    %v502 = vshrl.u32 %v501, 7
    %v503 = vsub.s32 0, %v502
    %v504 = vrot.slane %v464, %v503
    %v513 = vadd.f32 %v476, %v465
    %v514 = vadd.f32 %v480, %v466
    %v515 = vadd.f32 %v484, %v467
    %v516 = vadd.f32 %v488, %v468
    %v517 = vadd.f32 %v492, %v469
    %v518 = vadd.f32 %v496, %v470
    %v519 = vadd.f32 %v500, %v471
    %v520 = vadd.f32 %v504, %v472
    %v521 = vmax.f32 %v513, 0.0
    %v522 = vmax.f32 %v514, 0.0
    %v523 = vmax.f32 %v515, 0.0
    %v524 = vmax.f32 %v516, 0.0
    %v525 = vmax.f32 %v517, 0.0
    %v526 = vmax.f32 %v518, 0.0
    %v527 = vmax.f32 %v519, 0.0
    %v528 = vmax.f32 %v520, 0.0
    %v529 = vsel %vm56, %v521, -inf
    %v530 = vrot.slane %v529, 4
    %v531 = vmax.f32 %v529, %v530
    %v532 = vrot.slane %v531, 2
    %v533 = vmax.f32 %v531, %v532
    %v534 = vrot.slane %v533, 1
    %v535 = vmax.f32 %v533, %v534
    %v536 = vsel %vm56, %v522, -inf
    %v537 = vrot.slane %v536, 4
    %v538 = vmax.f32 %v536, %v537
    %v539 = vrot.slane %v538, 2
    %v540 = vmax.f32 %v538, %v539
    %v541 = vrot.slane %v540, 1
    %v542 = vmax.f32 %v540, %v541
    %v543 = vsel %vm56, %v523, -inf
    %v544 = vrot.slane %v543, 4
    %v545 = vmax.f32 %v543, %v544
    %v546 = vrot.slane %v545, 2
    %v547 = vmax.f32 %v545, %v546
    %v548 = vrot.slane %v547, 1
    %v549 = vmax.f32 %v547, %v548
    %v550 = vsel %vm56, %v524, -inf
    %v551 = vrot.slane %v550, 4
    %v552 = vmax.f32 %v550, %v551
    %v553 = vrot.slane %v552, 2
    %v554 = vmax.f32 %v552, %v553
    %v555 = vrot.slane %v554, 1
    %v556 = vmax.f32 %v554, %v555
    %v557 = vsel %vm56, %v525, -inf
    %v558 = vrot.slane %v557, 4
    %v559 = vmax.f32 %v557, %v558
    %v560 = vrot.slane %v559, 2
    %v561 = vmax.f32 %v559, %v560
    %v562 = vrot.slane %v561, 1
    %v563 = vmax.f32 %v561, %v562
    %v564 = vsel %vm56, %v526, -inf
    %v565 = vrot.slane %v564, 4
    %v566 = vmax.f32 %v564, %v565
    %v567 = vrot.slane %v566, 2
    %v568 = vmax.f32 %v566, %v567
    %v569 = vrot.slane %v568, 1
    %v570 = vmax.f32 %v568, %v569
    %v571 = vsel %vm56, %v527, -inf
    %v572 = vrot.slane %v571, 4
    %v573 = vmax.f32 %v571, %v572
    %v574 = vrot.slane %v573, 2
    %v575 = vmax.f32 %v573, %v574
    %v576 = vrot.slane %v575, 1
    %v577 = vmax.f32 %v575, %v576
    %v578 = vsel %vm56, %v528, -inf
    %v579 = vrot.slane %v578, 4
    %v580 = vmax.f32 %v578, %v579
    %v581 = vrot.slane %v580, 2
    %v582 = vmax.f32 %v580, %v581
    %v583 = vrot.slane %v582, 1
    %v584 = vmax.f32 %v582, %v583
    %v585 = vsub.f32 %v521, %v535
    %v586 = vsub.f32 %v522, %v542
    %v587 = vsub.f32 %v523, %v549
    %v588 = vsub.f32 %v524, %v556
    %v589 = vsub.f32 %v525, %v563
    %v590 = vsub.f32 %v526, %v570
    %v591 = vsub.f32 %v527, %v577
    %v592 = vsub.f32 %v528, %v584
    %v593 = vmul.f32 %v585, 1.442695
    %v594 = vpow.pop %v593
    %v595 = vmul.f32 %v586, 1.442695
    %v596 = vpow.pop %v595
    %v597 = vmul.f32 %v587, 1.442695
    %v598 = vpow.pop %v597
    %v599 = vmul.f32 %v588, 1.442695
    %v600 = vpow.pop %v599
    %v601 = vmul.f32 %v589, 1.442695
    %v602 = vpow.pop %v601
    %v603 = vmul.f32 %v590, 1.442695
    %v604 = vpow.pop %v603
    %v605 = vmul.f32 %v591, 1.442695
    %v606 = vpow.pop %v605
    %v607 = vmul.f32 %v592, 1.442695
    %v608 = vpow.pop %v607
    %v609 = vsel %vm56, %v594, 0.0
    %v610 = vrot.slane %v609, 4
    %v611 = vadd.f32 %v609, %v610
    %v612 = vrot.slane %v611, 2
    %v613 = vadd.f32 %v611, %v612
    %v614 = vrot.slane %v613, 1
    %v615 = vadd.f32 %v613, %v614
    %v616 = vsel %vm56, %v596, 0.0
    %v617 = vrot.slane %v616, 4
    %v618 = vadd.f32 %v616, %v617
    %v619 = vrot.slane %v618, 2
    %v620 = vadd.f32 %v618, %v619
    %v621 = vrot.slane %v620, 1
    %v622 = vadd.f32 %v620, %v621
    %v623 = vsel %vm56, %v598, 0.0
    %v624 = vrot.slane %v623, 4
    %v625 = vadd.f32 %v623, %v624
    %v626 = vrot.slane %v625, 2
    %v627 = vadd.f32 %v625, %v626
    %v628 = vrot.slane %v627, 1
    %v629 = vadd.f32 %v627, %v628
    %v630 = vsel %vm56, %v600, 0.0
    %v631 = vrot.slane %v630, 4
    %v632 = vadd.f32 %v630, %v631
    %v633 = vrot.slane %v632, 2
    %v634 = vadd.f32 %v632, %v633
    %v635 = vrot.slane %v634, 1
    %v636 = vadd.f32 %v634, %v635
    %v637 = vsel %vm56, %v602, 0.0
    %v638 = vrot.slane %v637, 4
    %v639 = vadd.f32 %v637, %v638
    %v640 = vrot.slane %v639, 2
    %v641 = vadd.f32 %v639, %v640
    %v642 = vrot.slane %v641, 1
    %v643 = vadd.f32 %v641, %v642
    %v644 = vsel %vm56, %v604, 0.0
    %v645 = vrot.slane %v644, 4
    %v646 = vadd.f32 %v644, %v645
    %v647 = vrot.slane %v646, 2
    %v648 = vadd.f32 %v646, %v647
    %v649 = vrot.slane %v648, 1
    %v650 = vadd.f32 %v648, %v649
    %v651 = vsel %vm56, %v606, 0.0
    %v652 = vrot.slane %v651, 4
    %v653 = vadd.f32 %v651, %v652
    %v654 = vrot.slane %v653, 2
    %v655 = vadd.f32 %v653, %v654
    %v656 = vrot.slane %v655, 1
    %v657 = vadd.f32 %v655, %v656
    %v658 = vsel %vm56, %v608, 0.0
    %v659 = vrot.slane %v658, 4
    %v660 = vadd.f32 %v658, %v659
    %v661 = vrot.slane %v660, 2
    %v662 = vadd.f32 %v660, %v661
    %v663 = vrot.slane %v662, 1
    %v664 = vadd.f32 %v662, %v663
    %v665 = vrcp.pop %v615
    %v666 = vrcp.pop %v622
    %v667 = vrcp.pop %v629
    %v668 = vrcp.pop %v636
    %v669 = vrcp.pop %v643
    %v670 = vrcp.pop %v650
    %v671 = vrcp.pop %v657
    %v672 = vrcp.pop %v664
    %v673 = vmul.f32 %v615, %v665
    %v674 = vmul.f32 %v622, %v666
    %v675 = vmul.f32 %v629, %v667
    %v676 = vmul.f32 %v636, %v668
    %v677 = vmul.f32 %v643, %v669
    %v678 = vmul.f32 %v650, %v670
    %v679 = vmul.f32 %v657, %v671
    %v680 = vmul.f32 %v664, %v672
    %v681 = vsub.f32 2.0, %v673
    %v682 = vsub.f32 2.0, %v674
    %v683 = vsub.f32 2.0, %v675
    %v684 = vsub.f32 2.0, %v676
    %v685 = vsub.f32 2.0, %v677
    %v686 = vsub.f32 2.0, %v678
    %v687 = vsub.f32 2.0, %v679
    %v688 = vsub.f32 2.0, %v680
    %v689 = vmul.f32 %v665, %v681
    %v690 = vmul.f32 %v666, %v682
    %v691 = vmul.f32 %v667, %v683
    %v692 = vmul.f32 %v668, %v684
    %v693 = vmul.f32 %v669, %v685
    %v694 = vmul.f32 %v670, %v686
    %v695 = vmul.f32 %v671, %v687
    %v696 = vmul.f32 %v672, %v688
    %v697 = vld [vmem:[%s2] sm:$0xff]
    %v698 = vld [vmem:[%s2 + $0x8] sm:$0xff]
    %v699 = vld [vmem:[%s2 + $0x10] sm:$0xff]
    %v700 = vld [vmem:[%s2 + $0x18] sm:$0xff]
    %v701 = vld [vmem:[%s2 + $0x20] sm:$0xff]
    %v702 = vld [vmem:[%s2 + $0x28] sm:$0xff]
    %v703 = vld [vmem:[%s2 + $0x30] sm:$0xff]
    %v704 = vld [vmem:[%s2 + $0x38] sm:$0xff]
    %v705 = vmul.f32 %v594, %v689
    %v706 = vmul.f32 %v596, %v690
    %v707 = vmul.f32 %v598, %v691
    %v708 = vmul.f32 %v600, %v692
    %v709 = vmul.f32 %v602, %v693
    %v710 = vmul.f32 %v604, %v694
    %v711 = vmul.f32 %v606, %v695
    %v712 = vmul.f32 %v608, %v696
    %v713 = vmul.f32 %v697, %v705
    %v714 = vmul.f32 %v698, %v706
    %v715 = vmul.f32 %v699, %v707
    %v716 = vmul.f32 %v700, %v708
    %v717 = vmul.f32 %v701, %v709
    %v718 = vmul.f32 %v702, %v710
    %v719 = vmul.f32 %v703, %v711
    %v720 = vmul.f32 %v704, %v712
    %v721 = vsel %vm56, %v713, 0.0
    %v722 = vrot.slane %v721, 4
    %v723 = vadd.f32 %v721, %v722
    %v724 = vrot.slane %v723, 2
    %v725 = vadd.f32 %v723, %v724
    %v726 = vrot.slane %v725, 1
    %v727 = vadd.f32 %v725, %v726
    %v728 = vsel %vm56, %v714, 0.0
    %v729 = vrot.slane %v728, 4
    %v730 = vadd.f32 %v728, %v729
    %v731 = vrot.slane %v730, 2
    %v732 = vadd.f32 %v730, %v731
    %v733 = vrot.slane %v732, 1
    %v734 = vadd.f32 %v732, %v733
    %v735 = vsel %vm56, %v715, 0.0
    %v736 = vrot.slane %v735, 4
    %v737 = vadd.f32 %v735, %v736
    %v738 = vrot.slane %v737, 2
    %v739 = vadd.f32 %v737, %v738
    %v740 = vrot.slane %v739, 1
    %v741 = vadd.f32 %v739, %v740
    %v742 = vsel %vm56, %v716, 0.0
    %v743 = vrot.slane %v742, 4
    %v744 = vadd.f32 %v742, %v743
    %v745 = vrot.slane %v744, 2
    %v746 = vadd.f32 %v744, %v745
    %v747 = vrot.slane %v746, 1
    %v748 = vadd.f32 %v746, %v747
    %v749 = vsel %vm56, %v717, 0.0
    %v750 = vrot.slane %v749, 4
    %v751 = vadd.f32 %v749, %v750
    %v752 = vrot.slane %v751, 2
    %v753 = vadd.f32 %v751, %v752
    %v754 = vrot.slane %v753, 1
    %v755 = vadd.f32 %v753, %v754
    %v756 = vsel %vm56, %v718, 0.0
    %v757 = vrot.slane %v756, 4
    %v758 = vadd.f32 %v756, %v757
    %v759 = vrot.slane %v758, 2
    %v760 = vadd.f32 %v758, %v759
    %v761 = vrot.slane %v760, 1
    %v762 = vadd.f32 %v760, %v761
    %v763 = vsel %vm56, %v719, 0.0
    %v764 = vrot.slane %v763, 4
    %v765 = vadd.f32 %v763, %v764
    %v766 = vrot.slane %v765, 2
    %v767 = vadd.f32 %v765, %v766
    %v768 = vrot.slane %v767, 1
    %v769 = vadd.f32 %v767, %v768
    %v770 = vsel %vm56, %v720, 0.0
    %v771 = vrot.slane %v770, 4
    %v772 = vadd.f32 %v770, %v771
    %v773 = vrot.slane %v772, 2
    %v774 = vadd.f32 %v772, %v773
    %v775 = vrot.slane %v774, 1
    %v776 = vadd.f32 %v774, %v775
    %v777 = vld [vmem:[%s10] sm:$0xff]
    %v778 = vld [vmem:[%s10 + $0x8] sm:$0xff]
    %vm787 = vcmask 1041409
    %v788 = vsel %vm787, %v734, %v727
    %vm789 = vcmask 1042434
    %v790 = vsel %vm789, %v741, %v788
    %vm791 = vcmask 1043459
    %v792 = vsel %vm791, %v748, %v790
    %vm793 = vcmask 1044484
    %v794 = vsel %vm793, %v755, %v792
    %vm795 = vcmask 1045509
    %v796 = vsel %vm795, %v762, %v794
    %vm797 = vcmask 1046534
    %v798 = vsel %vm797, %v769, %v796
    %vm799 = vcmask 1047559
    %v800 = vsel %vm799, %v776, %v798
    %v801 = vsel %vm56, %v800, 0
    %803 = vmatprep.subr.mxu0 0.0
    %804 = vmatpush1.msra.mxu0 0.0
    %805 = vmatprep.subr.mxu0 0.0
    %806 = vmatpush1.msra.mxu0 0.0
    %807 = vmatprep.subr.mxu0 0.0
    %808 = vmatpush1.msra.mxu0 0.0
    %809 = vmatprep.subr.mxu0 0.0
    %810 = vmatpush1.msra.mxu0 0.0
    %811 = vmatprep.subr.mxu0 0.0
    %812 = vmatpush1.msra.mxu0 0.0
    %813 = vmatprep.subr.mxu0 0.0
    %814 = vmatpush1.msra.mxu0 0.0
    %815 = vmatprep.subr.mxu0 0.0
    %816 = vmatpush1.msra.mxu0 0.0
    %817 = vmatprep.subr.mxu0 0.0
    %818 = vmatpush1.msra.mxu0 0.0
    %819 = vmatprep.subr.mxu0 0.0
    %820 = vmatpush1.msra.mxu0 0.0
    %821 = vmatprep.subr.mxu0 0.0
    %822 = vmatpush1.msra.mxu0 0.0
    %823 = vmatprep.subr.mxu0 0.0
    %824 = vmatpush1.msra.mxu0 0.0
    %825 = vmatprep.subr.mxu0 0.0
    %826 = vmatpush1.msra.mxu0 0.0
    %827 = vmatprep.subr.mxu0 0.0
    %828 = vmatpush1.msra.mxu0 0.0
    %829 = vmatprep.subr.mxu0 0.0
    %830 = vmatpush1.msra.mxu0 0.0
    %831 = vmatprep.subr.mxu0 0.0
    %832 = vmatpush1.msra.mxu0 %v778
    %833 = vmatprep.subr.mxu0 0.0
    %834 = vmatpush1.msra.mxu0 %v777
    %835 = vmatprep.subr.mxu0 0.0
    %836 = vmatpush2.msra.mxu0 0.0
    %837 = vmatprep.subr.mxu0 0.0
    %838 = vmatpush2.msra.mxu0 0.0
    %839 = vmatprep.subr.mxu0 0.0
    %840 = vmatpush2.msra.mxu0 0.0
    %841 = vmatprep.subr.mxu0 0.0
    %842 = vmatpush2.msra.mxu0 0.0
    %843 = vmatprep.subr.mxu0 0.0
    %844 = vmatpush2.msra.mxu0 0.0
    %845 = vmatprep.subr.mxu0 0.0
    %846 = vmatpush2.msra.mxu0 0.0
    %847 = vmatprep.subr.mxu0 0.0
    %848 = vmatpush2.msra.mxu0 0.0
    %849 = vmatprep.subr.mxu0 0.0
    %850 = vmatpush2.msra.mxu0 0.0
    %851 = vmatprep.subr.mxu0 0.0
    %852 = vmatpush2.msra.mxu0 0.0
    %853 = vmatprep.subr.mxu0 0.0
    %854 = vmatpush2.msra.mxu0 0.0
    %855 = vmatprep.subr.mxu0 0.0
    %856 = vmatpush2.msra.mxu0 0.0
    %857 = vmatprep.subr.mxu0 0.0
    %858 = vmatpush2.msra.mxu0 0.0
    %859 = vmatprep.subr.mxu0 0.0
    %860 = vmatpush2.msra.mxu0 0.0
    %861 = vmatprep.subr.mxu0 0.0
    %862 = vmatpush2.msra.mxu0 0.0
    %863 = vmatprep.subr.mxu0 0.0
    %864 = vmatpush2.msra.mxu0 0.0
    %865 = vmatprep.subr.mxu0 0.0
    %866 = vmatpush2.msra.mxu0 0.0
    %867 = vmatprep.mubr.f32.mxu0 0.0
    %868 = vmatmul.mubr.f32.gmra.mxu0 %v801
    %v869 = vpop.f32.mrf.mxu0
    %v870 = vadd.f32 0.0, %v869
    %v871 = vpop.f32.mrf.mxu0
    %872 = vdwg.mxu0
    %874 = vrot.lane.b32.xlu0 %v870, 16
    %v875 = vpop.permute.xlu0 %874
    %v877 = vadd.f32 %v412, %v875
    %v878 = vtanh.pop %v877
    %v879 = vld [vmem:[%s11] sm:$0xff]
    %v880 = vld [vmem:[%s11 + $0x8] sm:$0xff]
    %v881 = vld [vmem:[%s11 + $0x10] sm:$0xff]
    %v882 = vld [vmem:[%s11 + $0x18] sm:$0xff]
    %884 = vrot.lane.b32.xlu0 %v878, 112
    %v885 = vpop.permute.xlu0 %884
    %v886 = vsel %vm141, %v885, 0
    %888 = vmatprep.subr.mxu0 0.0
    %889 = vmatpush1.msra.mxu0 0.0
    %890 = vmatprep.subr.mxu0 0.0
    %891 = vmatpush1.msra.mxu0 0.0
    %892 = vmatprep.subr.mxu0 0.0
    %893 = vmatpush1.msra.mxu0 0.0
    %894 = vmatprep.subr.mxu0 0.0
    %895 = vmatpush1.msra.mxu0 0.0
    %896 = vmatprep.subr.mxu0 0.0
    %897 = vmatpush1.msra.mxu0 0.0
    %898 = vmatprep.subr.mxu0 0.0
    %899 = vmatpush1.msra.mxu0 0.0
    %900 = vmatprep.subr.mxu0 0.0
    %901 = vmatpush1.msra.mxu0 0.0
    %902 = vmatprep.subr.mxu0 0.0
    %903 = vmatpush1.msra.mxu0 0.0
    %904 = vmatprep.subr.mxu0 0.0
    %905 = vmatpush1.msra.mxu0 0.0
    %906 = vmatprep.subr.mxu0 0.0
    %907 = vmatpush1.msra.mxu0 0.0
    %908 = vmatprep.subr.mxu0 0.0
    %909 = vmatpush1.msra.mxu0 0.0
    %910 = vmatprep.subr.mxu0 0.0
    %911 = vmatpush1.msra.mxu0 0.0
    %912 = vmatprep.subr.mxu0 0.0
    %913 = vmatpush1.msra.mxu0 %v882
    %914 = vmatprep.subr.mxu0 0.0
    %915 = vmatpush1.msra.mxu0 %v881
    %916 = vmatprep.subr.mxu0 0.0
    %917 = vmatpush1.msra.mxu0 %v880
    %918 = vmatprep.subr.mxu0 0.0
    %919 = vmatpush1.msra.mxu0 %v879
    %920 = vmatprep.subr.mxu0 0.0
    %921 = vmatpush2.msra.mxu0 0.0
    %922 = vmatprep.subr.mxu0 0.0
    %923 = vmatpush2.msra.mxu0 0.0
    %924 = vmatprep.subr.mxu0 0.0
    %925 = vmatpush2.msra.mxu0 0.0
    %926 = vmatprep.subr.mxu0 0.0
    %927 = vmatpush2.msra.mxu0 0.0
    %928 = vmatprep.subr.mxu0 0.0
    %929 = vmatpush2.msra.mxu0 0.0
    %930 = vmatprep.subr.mxu0 0.0
    %931 = vmatpush2.msra.mxu0 0.0
    %932 = vmatprep.subr.mxu0 0.0
    %933 = vmatpush2.msra.mxu0 0.0
    %934 = vmatprep.subr.mxu0 0.0
    %935 = vmatpush2.msra.mxu0 0.0
    %936 = vmatprep.subr.mxu0 0.0
    %937 = vmatpush2.msra.mxu0 0.0
    %938 = vmatprep.subr.mxu0 0.0
    %939 = vmatpush2.msra.mxu0 0.0
    %940 = vmatprep.subr.mxu0 0.0
    %941 = vmatpush2.msra.mxu0 0.0
    %942 = vmatprep.subr.mxu0 0.0
    %943 = vmatpush2.msra.mxu0 0.0
    %944 = vmatprep.subr.mxu0 0.0
    %945 = vmatpush2.msra.mxu0 0.0
    %946 = vmatprep.subr.mxu0 0.0
    %947 = vmatpush2.msra.mxu0 0.0
    %948 = vmatprep.subr.mxu0 0.0
    %949 = vmatpush2.msra.mxu0 0.0
    %950 = vmatprep.subr.mxu0 0.0
    %951 = vmatpush2.msra.mxu0 0.0
    %952 = vmatprep.mubr.f32.mxu0 0.0
    %953 = vmatmul.mubr.f32.gmra.mxu0 %v886
    %v954 = vpop.f32.mrf.mxu0
    %v955 = vadd.f32 0.0, %v954
    %v956 = vpop.f32.mrf.mxu0
    %957 = vdwg.mxu0
    %959 = vst.msk [vmem:[#allocation2] sm:$0xff] %vm141, %v342
    %s960 = smul.u32 0, 8
    %s961 = scalar_lea.vmem [#allocation3], %s960
    %962 = vst.msk [vmem:[%s961] sm:$0xff] %vm141, %v342
    %s963 = scalar_lea.vmem [#allocation5], %s960
    %vm964 = vcmask 64512
    %965 = vst.msk [vmem:[%s963] sm:$0xff] %vm964, %v955
    // Predicated region
    $region54: #{lfads_generator_source_attn_rollout.1} parent=1 // pred_check
      _
    $region55: #{lfads_generator_source_attn_rollout.1} parent=1 // pred_check_branch
      %967 = sbr.rel (0) target = $region57
    $region56: #{lfads_generator_source_attn_rollout.1} parent=1 // pred_region
      %s969 = ssub.s32 128, 128
      %970 = vsyncadd [#allocation4], %s969
      %s972 = sshll.u32 [#allocation3], 4
      %s973 = int_to_ptr.vmem [resolvable:$true] %s972
      %975 = dma.vmem_to_hbm [thread:$0]  %s973, 128, %s12, [#allocation4]
    $region57: #{lfads_generator_source_attn_rollout.1} parent=1 // pred_fallthru
      _
    // Predicated region
    $region58: #{lfads_generator_source_attn_rollout.1} parent=1 // pred_check
      _
    $region59: #{lfads_generator_source_attn_rollout.1} parent=1 // pred_check_branch
      %977 = sbr.rel (0) target = $region61
    $region60: #{lfads_generator_source_attn_rollout.1} parent=1 // pred_region
      %s979 = ssub.s32 128, 128
      %980 = vsyncadd [#allocation6], %s979
      %s982 = sshll.u32 [#allocation5], 4
      %s983 = int_to_ptr.vmem [resolvable:$true] %s982
      %985 = dma.vmem_to_hbm [thread:$0]  %s983, 128, %s13, [#allocation6]
    $region61: #{lfads_generator_source_attn_rollout.1} parent=1 // pred_fallthru
      _
    // Predicated region
    $region62: #{lfads_generator_source_attn_rollout.1} parent=1 // pred_check
      _
    $region63: #{lfads_generator_source_attn_rollout.1} parent=1 // pred_check_branch
      %987 = sbr.rel (0) target = $region65
    $region64: #{lfads_generator_source_attn_rollout.1} parent=1 // pred_region
      %988 = dma.done [#allocation4], 128
    $region65: #{lfads_generator_source_attn_rollout.1} parent=1 // pred_fallthru
      _
    // Predicated region
    $region66: #{lfads_generator_source_attn_rollout.1} parent=1 // pred_check
      _
    $region67: #{lfads_generator_source_attn_rollout.1} parent=1 // pred_check_branch
      %990 = sbr.rel (0) target = $region69
    $region68: #{lfads_generator_source_attn_rollout.1} parent=1 // pred_region
      %991 = dma.done [#allocation6], 128
    $region69: #{lfads_generator_source_attn_rollout.1} parent=1 // pred_fallthru
      _
    %992 = vsyncpa [#allocation4], 1
    %993 = vsyncpa [#allocation6], 1

</llo_original>
